<compile_context>
chip_gen: v7x
topology: tpu7x:2x2x1
jax: 0.10.0
libtpu: 0.0.40
codegen_flags: <defaults>
</compile_context>

<pallas_src>
import functools

import jax
import jax.numpy as jnp
from jax.experimental import pallas as pl
from jax.experimental.pallas import tpu as pltpu


_NUM_CORES = 2                       # megacore split for phase 1; harmless on 1-TC chips
_SUBLANE = {4: 8, 2: 16, 1: 32}      # second-minor tile multiple by itemsize
_VMEM_LIMIT = 48 * 1024 * 1024       # leave headroom on v7x's 64 MiB per-TC VMEM


def _round_up(x, k):
    return ((x + k - 1) // k) * k


def _pick_tile_n(n, md, mh, itemsize, budget_bytes=24 << 20, cap=1024):
    """Largest N tile such that double-buffered z + f32 activations fit the budget."""
    sub = _SUBLANE.get(itemsize, 8)
    z_row = _round_up(md, 128) * itemsize        # padded lane width of the z tile
    act_row = 2 * _round_up(mh, 128) * 4         # (tn, M*H) pre/post-tanh in f32
    per_row = 2 * z_row + act_row
    tn = max(sub, (budget_bytes // per_row) // sub * sub)
    return int(min(tn, cap, _round_up(n, sub)))


# ----------------------------------------------------------------------------
# Phase 1: per-metapath score sums over all nodes (fused block-diag matmuls).
# ----------------------------------------------------------------------------
def _make_scores_kernel(n_total, tn, steps):
    def scores_kernel(z_ref, w1_ref, b1_ref, w2_ref, ssum_ref):
        c = pl.program_id(0)     # "parallel" core axis
        i = pl.program_id(1)     # "arbitrary" accumulation axis

        @pl.when(i == 0)
        def _():
            ssum_ref[...] = jnp.zeros_like(ssum_ref)

        # Mask rows of clamped / partial tail tiles so they never enter the mean.
        tile_idx = c * steps + i
        row0 = tile_idx * tn
        row_ids = jax.lax.broadcasted_iota(jnp.int32, (tn, 1), 0)
        valid = (row0 + row_ids) < n_total                           # (tn, 1)

        z2 = z_ref[...]                                              # (tn, M*D) lane-dense
        h = jnp.tanh(
            jnp.dot(z2, w1_ref[...], preferred_element_type=jnp.float32)
            + b1_ref[...]
        )                                                            # (tn, M*H) f32
        s = jnp.dot(h, w2_ref[...], preferred_element_type=jnp.float32)  # (tn, M)
        s = jnp.where(valid, s, 0.0)
        col = jnp.sum(s, axis=0, keepdims=True)                      # (1, M)
        # Grid-resident per-core accumulator; row 0 holds the real sum.
        ssum_ref[...] += jnp.broadcast_to(col, ssum_ref.shape)       # (8, M)

    return scores_kernel


# ----------------------------------------------------------------------------
# Phase 2: out_tile = z2_tile @ blockdiag(beta_m * I_D)   (one MXU matmul).
# ----------------------------------------------------------------------------
def _weighted_sum_kernel(z_ref, bmat_ref, out_ref):
    out_ref[...] = jnp.dot(
        z_ref[...], bmat_ref[...], preferred_element_type=jnp.float32
    ).astype(out_ref.dtype)


@functools.partial(jax.jit, static_argnames=("tile_n",))
def semantic_attention(z, w1, b1, w2, *, tile_n=None):
    """z: (N, M, D); w1: (D, H); b1: (H,); w2: (H,). Returns (N, D)."""
    n, m, d = z.shape
    h = w1.shape[1]
    md, mh = m * d, m * h

    compute_dtype = jnp.bfloat16 if z.dtype == jnp.bfloat16 else jnp.float32
    itemsize = z.dtype.itemsize
    sub = _SUBLANE.get(itemsize, 8)

    # Lane-dense layout: free contiguous reshape on the host.
    z2 = z.reshape(n, md)

    # Block-diagonal weights so each tile is one fused MXU matmul.
    eye_m = jnp.eye(m, dtype=jnp.float32)
    w1f = w1.astype(jnp.float32)
    w1_bd = jnp.einsum("mk,dh->mdkh", eye_m, w1f).reshape(md, mh).astype(compute_dtype)
    b1_bd = jnp.tile(b1.astype(jnp.float32).reshape(1, h), (1, m))            # (1, M*H)
    w2_bd = jnp.einsum("km,h->khm", eye_m, w2.astype(jnp.float32)).reshape(mh, m)

    if tile_n is None:
        tn = _pick_tile_n(n, md, mh, itemsize)
    else:
        tn = int(min(_round_up(int(tile_n), sub), _round_up(n, sub)))
    t_blocks = pl.cdiv(n, tn)
    num_cores = min(_NUM_CORES, t_blocks)
    steps = pl.cdiv(t_blocks, num_cores)

    def z_map_p1(c, i):
        # Clamp out-of-range tiles (they are fully masked in-kernel).
        t = c * steps + i
        return (jnp.minimum(t, t_blocks - 1), 0)

    # ---- phase 1: score sums ---------------------------------------------------
    scores_cost = pl.CostEstimate(
        flops=int(2 * n * md * mh + 2 * n * mh * m),
        transcendentals=int(n * mh),
        bytes_accessed=int(n * md * itemsize + (md * mh + mh + mh * m) * 4),
    )
    ssum_tiles = pl.pallas_call(
        _make_scores_kernel(n, tn, steps),
        out_shape=jax.ShapeDtypeStruct((num_cores * 8, m), jnp.float32),
        grid=(num_cores, steps),
        in_specs=[
            pl.BlockSpec((tn, md), z_map_p1),
            pl.BlockSpec((md, mh), lambda c, i: (0, 0)),
            pl.BlockSpec((1, mh), lambda c, i: (0, 0)),
            pl.BlockSpec((mh, m), lambda c, i: (0, 0)),
        ],
        out_specs=pl.BlockSpec((8, m), lambda c, i: (c, 0)),
        compiler_params=pltpu.CompilerParams(
            dimension_semantics=("parallel", "arbitrary"),
            vmem_limit_bytes=_VMEM_LIMIT,
        ),
        cost_estimate=scores_cost,
    )(z2, w1_bd, b1_bd, w2_bd)

    # Tiny (M,) reduction + softmax: fused into the surrounding jit program.
    ssum = ssum_tiles.reshape(num_cores, 8, m)[:, 0, :].sum(axis=0)           # (M,)
    beta = jax.nn.softmax(ssum / jnp.float32(n), axis=0)                      # (M,) f32

    # Phase-2 weight: blockdiag(beta_m * I_D) of shape (M*D, D).
    bmat = (beta[:, None, None] * jnp.eye(d, dtype=jnp.float32)[None]).reshape(md, d)
    bmat = bmat.astype(compute_dtype)

    # ---- phase 2: weighted sum over metapaths -----------------------------------
    wsum_cost = pl.CostEstimate(
        flops=int(2 * n * md * d),
        transcendentals=0,
        bytes_accessed=int(n * md * itemsize + n * d * itemsize + md * d * 4),
    )
    out = pl.pallas_call(
        _weighted_sum_kernel,
        out_shape=jax.ShapeDtypeStruct((n, d), z.dtype),
        grid=(t_blocks,),
        in_specs=[
            pl.BlockSpec((tn, md), lambda i: (i, 0)),
            pl.BlockSpec((md, d), lambda i: (0, 0)),
        ],
        out_specs=pl.BlockSpec((tn, d), lambda i: (i, 0)),
        compiler_params=pltpu.CompilerParams(
            dimension_semantics=("parallel",),
            vmem_limit_bytes=_VMEM_LIMIT,
        ),
        cost_estimate=wsum_cost,
    )(z2, bmat)
    return out


def semantic_attention_ref(z, w1, b1, w2):
    """Plain-JAX reference mirroring the PyTorch forward."""
    s = jnp.tanh(jnp.einsum("nmd,dh->nmh", z, w1) + b1) @ w2   # (N, M)
    w = jnp.mean(s, axis=0)                                    # (M,)
    beta = jax.nn.softmax(w, axis=0)                           # (M,)
    return jnp.sum(beta[None, :, None] * z, axis=1)            # (N, D)


if __name__ == "__main__":
    # Small shapes: N nodes = 40, M metapaths = 4, in_size = 32, hidden_size = 64.
    # M*D = 128 => exactly one lane-dense stripe per node.
    N, M, D, H = 40, 4, 32, 64
    key = jax.random.PRNGKey(0)
    kz, kw1, kb1, kw2 = jax.random.split(key, 4)

    z = jax.random.normal(kz, (N, M, D), dtype=jnp.float32)
    w1 = jax.random.normal(kw1, (D, H), dtype=jnp.float32) * 0.1
    b1 = jax.random.normal(kb1, (H,), dtype=jnp.float32) * 0.1
    w2 = jax.random.normal(kw2, (H,), dtype=jnp.float32) * 0.1

    ref = semantic_attention_ref(z, w1, b1, w2)

    # Forced small tile: exercises the 2-D (core, step) grid, clamped/masked tail
    # tile (40 = 2*16 + 8) and cross-tile score accumulation.
    out_tiled = jax.block_until_ready(semantic_attention(z, w1, b1, w2, tile_n=16))
    assert out_tiled.shape == (N, D)
    assert jnp.allclose(out_tiled, ref, atol=1e-5, rtol=1e-5), "tiled mismatch vs reference"

    # Default (auto) tile: single-tile path.
    out_auto = jax.block_until_ready(semantic_attention(z, w1, b1, w2))
    assert jnp.allclose(out_auto, ref, atol=1e-5, rtol=1e-5), "auto-tile mismatch vs reference"

    print("KERNEL_OK")
</pallas_src>

<mosaic_0001>
module attributes {stable_mosaic.version = 11 : i64} {
  func.func @scores_kernel(%arg0: i32, %arg1: i32, %arg2: memref<16x128xf32, #tpu.memory_space<vmem>>, %arg3: memref<128x256xf32, #tpu.memory_space<vmem>>, %arg4: memref<1x256xf32, #tpu.memory_space<vmem>>, %arg5: memref<256x4xf32, #tpu.memory_space<vmem>>, %arg6: memref<8x4xf32, #tpu.memory_space<vmem>>) attributes {dimension_semantics = [#tpu.dimension_semantics<parallel>, #tpu.dimension_semantics<arbitrary>], iteration_bounds = array<i64: 2, 2>, scalar_prefetch = 0 : i64, scratch_operands = 0 : i64, tpu.core_type = #tpu.core_type<tc>, window_params = [{transform_indices = @transform_0, window_bounds = array<i64: 16, 128>}, {pipeline_mode = #tpu.pipeline_mode<synchronous>, transform_indices = @transform_1, window_bounds = array<i64: 128, 256>}, {pipeline_mode = #tpu.pipeline_mode<synchronous>, transform_indices = @transform_2, window_bounds = array<i64: 1, 256>}, {pipeline_mode = #tpu.pipeline_mode<synchronous>, transform_indices = @transform_3, window_bounds = array<i64: 256, 4>}, {transform_indices = @transform_4, window_bounds = array<i64: 8, 4>}]} {
    %c0_i32 = arith.constant 0 : i32
    %0 = arith.cmpi eq, %arg1, %c0_i32 : i32
    %1 = arith.extui %0 : i1 to i32
    %c0_i32_0 = arith.constant 0 : i32
    %2 = arith.cmpi ne, %1, %c0_i32_0 : i32
    scf.if %2 {
      %cst_15 = arith.constant 0.000000e+00 : f32
      %31 = vector.broadcast %cst_15 : f32 to vector<8x4xf32>
      %c0_16 = arith.constant 0 : index
      %c0_17 = arith.constant 0 : index
      %32 = vector.load %arg6[%c0_16, %c0_17] : memref<8x4xf32, #tpu.memory_space<vmem>>, vector<8x4xf32>
      tpu.vector_store %arg6[%c0_16, %c0_17], %31 {strides = array<i32>} : memref<8x4xf32, #tpu.memory_space<vmem>>, vector<8x4xf32>,
    } else {
    }
    %c2_i32 = arith.constant 2 : i32
    %3 = arith.muli %arg0, %c2_i32 : i32
    %4 = arith.addi %3, %arg1 : i32
    %c16_i32 = arith.constant 16 : i32
    %5 = arith.muli %4, %c16_i32 : i32
    %6 = tpu.iota {dimensions = array<i32: 0>} : vector<16x1xi32>
    %7 = vector.broadcast %5 : i32 to vector<16x1xi32>
    %8 = arith.addi %7, %6 : vector<16x1xi32>
    %c40_i32 = arith.constant 40 : i32
    %9 = vector.broadcast %c40_i32 : i32 to vector<16x1xi32>
    %10 = arith.cmpi slt, %8, %9 : vector<16x1xi32>
    %c0 = arith.constant 0 : index
    %c0_1 = arith.constant 0 : index
    %11 = vector.load %arg2[%c0, %c0_1] : memref<16x128xf32, #tpu.memory_space<vmem>>, vector<16x128xf32>
    %c0_2 = arith.constant 0 : index
    %c0_3 = arith.constant 0 : index
    %12 = vector.load %arg3[%c0_2, %c0_3] : memref<128x256xf32, #tpu.memory_space<vmem>>, vector<128x256xf32>
    %cst = arith.constant dense<0.000000e+00> : vector<16x256xf32>
    %13 = tpu.matmul %11, %12, %cst {dimension_numbers = #tpu.dot_dimension_numbers<[1], [0], [0], [1], [0, 0, 1, 1], [], []>} : vector<16x128xf32>, vector<128x256xf32>, vector<16x256xf32> -> vector<16x256xf32>
    %c0_4 = arith.constant 0 : index
    %c0_5 = arith.constant 0 : index
    %14 = vector.load %arg4[%c0_4, %c0_5] : memref<1x256xf32, #tpu.memory_space<vmem>>, vector<1x256xf32>
    %15 = vector.broadcast %14 : vector<1x256xf32> to vector<16x256xf32>
    %16 = arith.addf %13, %15 : vector<16x256xf32>
    %17 = math.tanh %16 : vector<16x256xf32>
    %c0_6 = arith.constant 0 : index
    %c0_7 = arith.constant 0 : index
    %18 = vector.load %arg5[%c0_6, %c0_7] : memref<256x4xf32, #tpu.memory_space<vmem>>, vector<256x4xf32>
    %cst_8 = arith.constant dense<0.000000e+00> : vector<16x4xf32>
    %19 = tpu.matmul %17, %18, %cst_8 {dimension_numbers = #tpu.dot_dimension_numbers<[1], [0], [0], [1], [0, 0, 1, 1], [], []>} : vector<16x256xf32>, vector<256x4xf32>, vector<16x4xf32> -> vector<16x4xf32>
    %cst_9 = arith.constant 0.000000e+00 : f32
    %20 = vector.shape_cast %10 : vector<16x1xi1> to vector<16x1xi1>
    %21 = vector.broadcast %20 : vector<16x1xi1> to vector<16x4xi1>
    %22 = vector.broadcast %cst_9 : f32 to vector<16x4xf32>
    %23 = arith.select %21, %19, %22 : vector<16x4xi1>, vector<16x4xf32>
    %cst_10 = arith.constant dense<0.000000e+00> : vector<4xf32>
    %24 = vector.multi_reduction <add>, %23, %cst_10 [0] : vector<16x4xf32> to vector<4xf32>
    %25 = vector.shape_cast %24 : vector<4xf32> to vector<1x4xf32>
    %c0_11 = arith.constant 0 : index
    %c0_12 = arith.constant 0 : index
    %26 = vector.load %arg6[%c0_11, %c0_12] : memref<8x4xf32, #tpu.memory_space<vmem>>, vector<8x4xf32>
    %27 = vector.shape_cast %25 : vector<1x4xf32> to vector<1x4xf32>
    %28 = vector.broadcast %27 : vector<1x4xf32> to vector<8x4xf32>
    %29 = arith.addf %26, %28 : vector<8x4xf32>
    %c0_13 = arith.constant 0 : index
    %c0_14 = arith.constant 0 : index
    %30 = vector.load %arg6[%c0_13, %c0_14] : memref<8x4xf32, #tpu.memory_space<vmem>>, vector<8x4xf32>
    tpu.vector_store %arg6[%c0_13, %c0_14], %29 {strides = array<i32>} : memref<8x4xf32, #tpu.memory_space<vmem>>, vector<8x4xf32>,
    return
  }
  func.func @transform_0(%arg0: i32, %arg1: i32) -> (i32, i32) {
    %c2_i32 = arith.constant 2 : i32
    %0 = arith.muli %arg0, %c2_i32 : i32
    %1 = arith.addi %0, %arg1 : i32
    %c2_i32_0 = arith.constant 2 : i32
    %2 = arith.minsi %1, %c2_i32_0 : i32
    %c0_i32 = arith.constant 0 : i32
    %c0_i32_1 = arith.constant 0 : i32
    return %2, %c0_i32 : i32, i32
  }
  func.func @transform_1(%arg0: i32, %arg1: i32) -> (i32, i32) {
    %c0_i32 = arith.constant 0 : i32
    %c0_i32_0 = arith.constant 0 : i32
    %c0_i32_1 = arith.constant 0 : i32
    return %c0_i32, %c0_i32_0 : i32, i32
  }
  func.func @transform_2(%arg0: i32, %arg1: i32) -> (i32, i32) {
    %c0_i32 = arith.constant 0 : i32
    %c0_i32_0 = arith.constant 0 : i32
    %c0_i32_1 = arith.constant 0 : i32
    return %c0_i32, %c0_i32_0 : i32, i32
  }
  func.func @transform_3(%arg0: i32, %arg1: i32) -> (i32, i32) {
    %c0_i32 = arith.constant 0 : i32
    %c0_i32_0 = arith.constant 0 : i32
    %c0_i32_1 = arith.constant 0 : i32
    return %c0_i32, %c0_i32_0 : i32, i32
  }
  func.func @transform_4(%arg0: i32, %arg1: i32) -> (i32, i32) {
    %c0_i32 = arith.constant 0 : i32
    %c0_i32_0 = arith.constant 0 : i32
    return %arg0, %c0_i32 : i32, i32
  }
}

module attributes {stable_mosaic.version = 11 : i64} {
  func.func @_weighted_sum_kernel(%arg0: i32, %arg1: memref<16x128xf32, #tpu.memory_space<vmem>>, %arg2: memref<128x32xf32, #tpu.memory_space<vmem>>, %arg3: memref<16x32xf32, #tpu.memory_space<vmem>>) attributes {dimension_semantics = [#tpu.dimension_semantics<parallel>], iteration_bounds = array<i64: 3>, scalar_prefetch = 0 : i64, scratch_operands = 0 : i64, tpu.core_type = #tpu.core_type<tc>, window_params = [{transform_indices = @transform_0, window_bounds = array<i64: 16, 128>}, {pipeline_mode = #tpu.pipeline_mode<synchronous>, transform_indices = @transform_1, window_bounds = array<i64: 128, 32>}, {transform_indices = @transform_2, window_bounds = array<i64: 16, 32>}]} {
    %c0 = arith.constant 0 : index
    %c0_0 = arith.constant 0 : index
    %0 = vector.load %arg1[%c0, %c0_0] : memref<16x128xf32, #tpu.memory_space<vmem>>, vector<16x128xf32>
    %c0_1 = arith.constant 0 : index
    %c0_2 = arith.constant 0 : index
    %1 = vector.load %arg2[%c0_1, %c0_2] : memref<128x32xf32, #tpu.memory_space<vmem>>, vector<128x32xf32>
    %cst = arith.constant dense<0.000000e+00> : vector<16x32xf32>
    %2 = tpu.matmul %0, %1, %cst {dimension_numbers = #tpu.dot_dimension_numbers<[1], [0], [0], [1], [0, 0, 1, 1], [], []>} : vector<16x128xf32>, vector<128x32xf32>, vector<16x32xf32> -> vector<16x32xf32>
    %c0_3 = arith.constant 0 : index
    %c0_4 = arith.constant 0 : index
    %3 = vector.load %arg3[%c0_3, %c0_4] : memref<16x32xf32, #tpu.memory_space<vmem>>, vector<16x32xf32>
    tpu.vector_store %arg3[%c0_3, %c0_4], %2 {strides = array<i32>} : memref<16x32xf32, #tpu.memory_space<vmem>>, vector<16x32xf32>,
    return
  }
  func.func @transform_0(%arg0: i32) -> (i32, i32) {
    %c0_i32 = arith.constant 0 : i32
    %c0_i32_0 = arith.constant 0 : i32
    return %arg0, %c0_i32 : i32, i32
  }
  func.func @transform_1(%arg0: i32) -> (i32, i32) {
    %c0_i32 = arith.constant 0 : i32
    %c0_i32_0 = arith.constant 0 : i32
    %c0_i32_1 = arith.constant 0 : i32
    return %c0_i32, %c0_i32_0 : i32, i32
  }
  func.func @transform_2(%arg0: i32) -> (i32, i32) {
    %c0_i32 = arith.constant 0 : i32
    %c0_i32_0 = arith.constant 0 : i32
    return %arg0, %c0_i32 : i32, i32
  }
}

</mosaic_0001>

<llo_original>
// kernel: semantic_attention.3
$region0: #{semantic_attention.3}
  #allocation0 [shape = 'u32[]', space=smem, size = 0x4, offset = 0x4, fixed_abs, tag = 'smem constant byte address 0x4 - core index']
  #allocation1 [shape = 'u32[144,128]{1,0:T(1,128)}', space=vmem, size = 0x12000, scoped, tag = 'internal scratch']
  %s0 = inlined_call_operand.vmem [shape: f32[40,128], index: 0, kind: input, shape index: {}]
  %s1 = inlined_call_operand.vmem [shape: f32[128,32], index: 1, kind: input, shape index: {}]
  %s2 = inlined_call_operand.vmem [shape: f32[40,32], index: 2, kind: output, shape index: {}]
  %s3 = sld [smem:[#allocation0]]
  $region89: #{semantic_attention.3} parent=0
    _
  %s5 = ssub.s32 1, %s3
  %s6 = scalar_select 0, %s5, %s3
  $region1: #{semantic_attention.3} parent=0
    #allocation2 [shape = 'u8[16384]{0}', space=vmem, size = 0x4000, scoped, tag = 'output window, operand 0']
    loop: start=0, step=1, limit=5
    $region2: #{semantic_attention.3} parent=1 // loop_pre_header
      _
    $region3: #{semantic_attention.3} parent=1 // loop_header
      %s8 = sphi 0, %s12
      %p9 = scmp.ge.s32.totalorder %s8, 5
      %s18 = sphi 0, %s20
      %s21 = sphi 0, %s18
      %s22 = sphi 0, %s21
      %s38 = sphi 0, %s22
      %s42 = sphi 0, %s42
      %s44 = sphi 0, %s42
      %s45 = sphi 0, %s44
      %s59 = sphi 0, %s45
      %s65 = sphi 0, %s67
      %s68 = sphi 0, %s65
      %s69 = sphi 0, %s68
      %s85 = sphi 0, %s69
    $region4: #{semantic_attention.3} parent=1 // loop_header_branch
      %11 = sbr.rel (%p9) target = $region8
    $region5: #{semantic_attention.3} parent=1 // loop_body
      %s13 = ssub.s32 %s8, 1
      %s14 = ssub.s32 %s8, 2
      %s15 = sadd.s32 %s8, 1
      %s16 = ssub.s32 %s8, %s15
      %p17 = scmp.eq.s32.totalorder %s16, 0
      %s19 = sadd.s32 %s18, 1
      %s20 = scalar_select %p17, %s18, %s19
      %p23 = pneg %p17
      %p24 = scmp.eq.s32.totalorder %s8, 2
      %p25 = por %p23, %p24
      %p26 = scmp.ne.s32.totalorder %s18, %s21
      %p27 = scmp.eq.s32.totalorder %s8, 0
      %p28 = por %p26, %p27
      %p29 = scmp.ne.s32.totalorder %s18, %s21
      %p30 = scmp.eq.s32.totalorder %s13, 2
      %p31 = por %p29, %p30
      %p32 = scmp.ne.s32.totalorder %s21, %s22
      %p33 = scmp.eq.s32.totalorder %s13, 0
      %p34 = por %p32, %p33
      %p35 = scmp.ne.s32.totalorder %s21, %s22
      %p36 = scmp.eq.s32.totalorder %s14, 2
      %p37 = por %p35, %p36
      %p39 = scmp.ne.s32.totalorder %s22, %s38
      %p40 = scmp.eq.s32.totalorder %s14, 0
      %p41 = por %p39, %p40
      %s43 = sadd.s32 %s42, 1
      %p46 = scmp.eq.s32.totalorder %s8, 2
      %p47 = scmp.ne.s32.totalorder %s42, %s44
      %p48 = scmp.eq.s32.totalorder %s8, 0
      %p49 = por %p47, %p48
      %p50 = scmp.ne.s32.totalorder %s42, %s44
      %p51 = scmp.eq.s32.totalorder %s13, 2
      %p52 = por %p50, %p51
      %p53 = scmp.ne.s32.totalorder %s44, %s45
      %p54 = scmp.eq.s32.totalorder %s13, 0
      %p55 = por %p53, %p54
      %p56 = scmp.ne.s32.totalorder %s44, %s45
      %p57 = scmp.eq.s32.totalorder %s14, 2
      %p58 = por %p56, %p57
      %p60 = scmp.ne.s32.totalorder %s45, %s59
      %p61 = scmp.eq.s32.totalorder %s14, 0
      %p62 = por %p60, %p61
      %s63 = ssub.s32 %s8, %s15
      %p64 = scmp.eq.s32.totalorder %s63, 0
      %s66 = sadd.s32 %s65, 1
      %s67 = scalar_select %p64, %s65, %s66
      %p70 = pneg %p64
      %p71 = scmp.eq.s32.totalorder %s8, 2
      %p72 = por %p70, %p71
      %p73 = scmp.ne.s32.totalorder %s65, %s68
      %p74 = scmp.eq.s32.totalorder %s8, 0
      %p75 = por %p73, %p74
      %p76 = scmp.ne.s32.totalorder %s65, %s68
      %p77 = scmp.eq.s32.totalorder %s13, 2
      %p78 = por %p76, %p77
      %p79 = scmp.ne.s32.totalorder %s68, %s69
      %p80 = scmp.eq.s32.totalorder %s13, 0
      %p81 = por %p79, %p80
      %p82 = scmp.ne.s32.totalorder %s68, %s69
      %p83 = scmp.eq.s32.totalorder %s14, 2
      %p84 = por %p82, %p83
      %p86 = scmp.ne.s32.totalorder %s69, %s85
      %p87 = scmp.eq.s32.totalorder %s14, 0
      %p88 = por %p86, %p87
      %p89 = scmp.le.s32.totalorder 1, %s8
      %p90 = scmp.lt.s32.totalorder %s8, 4
      %p91 = pnand %p89, %p90
      %p92 = pneg %p91
      // Predicated region
      $region9: #{semantic_attention.3} parent=5 // pred_check
        _
      $region10: #{semantic_attention.3} parent=5 // pred_check_branch
        %94 = sbr.rel (%p91) target = $region12
      $region11: #{semantic_attention.3} parent=5 // pred_region
        %s95 = ssub.s32 %s8, 1
        // Predicated region
        $region13: #{semantic_attention.3} parent=11 // pred_check
          %p96 = pneg %p55
        $region14: #{semantic_attention.3} parent=11 // pred_check_branch
          %98 = sbr.rel (%p96) target = $region16
        $region15: #{semantic_attention.3} parent=11 // pred_region
          _
        $region16: #{semantic_attention.3} parent=11 // pred_fallthru
          _
      $region12: #{semantic_attention.3} parent=5 // pred_fallthru
        _
      %p99 = scmp.lt.s32.totalorder %s8, 3
      // Predicated region
      $region17: #{semantic_attention.3} parent=5 // pred_check
        %p100 = pneg %p99
      $region18: #{semantic_attention.3} parent=5 // pred_check_branch
        %102 = sbr.rel (%p100) target = $region20
      $region19: #{semantic_attention.3} parent=5 // pred_region
        // Predicated region
        $region21: #{semantic_attention.3} parent=19 // pred_check
          %p103 = pneg %p28
        $region22: #{semantic_attention.3} parent=19 // pred_check_branch
          %105 = sbr.rel (%p103) target = $region24
        $region23: #{semantic_attention.3} parent=19 // pred_region
          %s106 = smul.u32 2, %s8
          %s107 = ssub.s32 5, %s106
          %p108 = scmp.lt.s32.totalorder %s107, 2
          %s109 = scalar_select %p108, %s107, 2
          %s110 = smul.u32 128, %s109
          %p111 = scmp.lt.s32.totalorder %s106, 4
          %s112 = scalar_select %p111, %s106, 4
          %s113 = smul.addr %s112, 8
          %s114 = scalar_lea.vmem %s0, %s113
          %s115 = smul.u32 2, %s8
          %s116 = ssub.s32 5, %s115
          %p117 = scmp.lt.s32.totalorder %s116, 2
          %s118 = scalar_select %p117, %s116, 2
          %s119 = smul.u32 128, %s118
        $region24: #{semantic_attention.3} parent=19 // pred_fallthru
          _
      $region20: #{semantic_attention.3} parent=5 // pred_fallthru
        _
      %p120 = scmp.le.s32.totalorder 1, %s8
      %p121 = scmp.lt.s32.totalorder %s8, 4
      %p122 = pnand %p120, %p121
      %p123 = pneg %p122
      // Predicated region
      $region25: #{semantic_attention.3} parent=5 // pred_check
        _
      $region26: #{semantic_attention.3} parent=5 // pred_check_branch
        %125 = sbr.rel (%p122) target = $region28
      $region27: #{semantic_attention.3} parent=5 // pred_region
        %s126 = ssub.s32 %s8, 1
        %s127 = smul.u32 2, %s13
        %s128 = ssub.s32 5, %s127
        %p129 = scmp.lt.s32.totalorder %s128, 2
        %s130 = scalar_select %p129, %s128, 2
        %s131 = smul.u32 128, %s130
        %p132 = scmp.lt.s32.totalorder %s127, 4
        %s133 = scalar_select %p132, %s127, 4
        %s134 = smul.addr %s133, 8
        %s135 = scalar_lea.vmem %s0, %s134
        %p136 = pneg %p34
        %p137 = pneg %p31
        %p138 = pneg %p55
        %p139 = pneg %p52
        %p140 = pneg %p81
        %p141 = pneg %p78
        %s142 = sand.u32 %s68, 1
        %s143 = sand.u32 %s68, 1
        %s144 = smul.addr %s143, 16
        %s145 = scalar_lea.vmem [#allocation2], %s144
        %s146 = smul.u32 2, %s13
        %s147 = ssub.s32 5, %s146
        %p148 = scmp.lt.s32.totalorder %s147, 2
        %s149 = scalar_select %p148, %s147, 2
        %s150 = smul.u32 128, %s149
        %p151 = scmp.lt.s32.totalorder %s146, 4
        %s152 = scalar_select %p151, %s146, 4
        %s153 = smul.addr %s152, 8
        %s154 = scalar_lea.vmem %s0, %s153
        %s155 = smul.u32 2, %s13
        %s156 = ssub.s32 5, %s155
        %p157 = scmp.lt.s32.totalorder %s156, 2
        %s158 = scalar_select %p157, %s156, 2
        %s159 = smul.u32 128, %s158
        %s160 = smul.u32 2, %s13
        %s161 = ssub.s32 5, %s160
        %p162 = scmp.lt.s32.totalorder %s161, 2
        %s163 = scalar_select %p162, %s161, 2
        %s164 = smul.u32 128, %s163
        %v165 = vld [vmem:[%s154] sm:$0xff]
        %v166 = vld [vmem:[%s154 + $0x8] sm:$0xff]
        %v167 = vld [vmem:[%s1] sm:$0xff]
        %v168 = vld [vmem:[%s1 + $0x8] sm:$0xff]
        %v169 = vld [vmem:[%s1 + $0x10] sm:$0xff]
        %v170 = vld [vmem:[%s1 + $0x18] sm:$0xff]
        %v171 = vld [vmem:[%s1 + $0x20] sm:$0xff]
        %v172 = vld [vmem:[%s1 + $0x28] sm:$0xff]
        %v173 = vld [vmem:[%s1 + $0x30] sm:$0xff]
        %v174 = vld [vmem:[%s1 + $0x38] sm:$0xff]
        %v175 = vld [vmem:[%s1 + $0x40] sm:$0xff]
        %v176 = vld [vmem:[%s1 + $0x48] sm:$0xff]
        %v177 = vld [vmem:[%s1 + $0x50] sm:$0xff]
        %v178 = vld [vmem:[%s1 + $0x58] sm:$0xff]
        %v179 = vld [vmem:[%s1 + $0x60] sm:$0xff]
        %v180 = vld [vmem:[%s1 + $0x68] sm:$0xff]
        %v181 = vld [vmem:[%s1 + $0x70] sm:$0xff]
        %v182 = vld [vmem:[%s1 + $0x78] sm:$0xff]
        %183 = vmatprep.subr.mxu0 0.0
        %184 = vmatpush1.msra.mxu0 %v167
        %185 = vmatprep.subr.mxu0 0.0
        %186 = vmatpush1.msra.mxu0 %v168
        %187 = vmatprep.subr.mxu0 0.0
        %188 = vmatpush1.msra.mxu0 %v169
        %189 = vmatprep.subr.mxu0 0.0
        %190 = vmatpush1.msra.mxu0 %v170
        %191 = vmatprep.subr.mxu0 0.0
        %192 = vmatpush1.msra.mxu0 %v171
        %193 = vmatprep.subr.mxu0 0.0
        %194 = vmatpush1.msra.mxu0 %v172
        %195 = vmatprep.subr.mxu0 0.0
        %196 = vmatpush1.msra.mxu0 %v173
        %197 = vmatprep.subr.mxu0 0.0
        %198 = vmatpush1.msra.mxu0 %v174
        %199 = vmatprep.subr.mxu0 0.0
        %200 = vmatpush1.msra.mxu0 %v175
        %201 = vmatprep.subr.mxu0 0.0
        %202 = vmatpush1.msra.mxu0 %v176
        %203 = vmatprep.subr.mxu0 0.0
        %204 = vmatpush1.msra.mxu0 %v177
        %205 = vmatprep.subr.mxu0 0.0
        %206 = vmatpush1.msra.mxu0 %v178
        %207 = vmatprep.subr.mxu0 0.0
        %208 = vmatpush1.msra.mxu0 %v179
        %209 = vmatprep.subr.mxu0 0.0
        %210 = vmatpush1.msra.mxu0 %v180
        %211 = vmatprep.subr.mxu0 0.0
        %212 = vmatpush1.msra.mxu0 %v181
        %213 = vmatprep.subr.mxu0 0.0
        %214 = vmatpush1.msra.mxu0 %v182
        %215 = vmatprep.subr.mxu0 0.0
        %216 = vmatpush1.msra.mxu0 0.0
        %217 = vmatprep.subr.mxu0 0.0
        %218 = vmatpush1.msra.mxu0 0.0
        %219 = vmatprep.subr.mxu0 0.0
        %220 = vmatpush1.msra.mxu0 0.0
        %221 = vmatprep.subr.mxu0 0.0
        %222 = vmatpush1.msra.mxu0 0.0
        %223 = vmatprep.subr.mxu0 0.0
        %224 = vmatpush1.msra.mxu0 0.0
        %225 = vmatprep.subr.mxu0 0.0
        %226 = vmatpush1.msra.mxu0 0.0
        %227 = vmatprep.subr.mxu0 0.0
        %228 = vmatpush1.msra.mxu0 0.0
        %229 = vmatprep.subr.mxu0 0.0
        %230 = vmatpush1.msra.mxu0 0.0
        %231 = vmatprep.subr.mxu0 0.0
        %232 = vmatpush1.msra.mxu0 0.0
        %233 = vmatprep.subr.mxu0 0.0
        %234 = vmatpush1.msra.mxu0 0.0
        %235 = vmatprep.subr.mxu0 0.0
        %236 = vmatpush1.msra.mxu0 0.0
        %237 = vmatprep.subr.mxu0 0.0
        %238 = vmatpush1.msra.mxu0 0.0
        %239 = vmatprep.subr.mxu0 0.0
        %240 = vmatpush1.msra.mxu0 0.0
        %241 = vmatprep.subr.mxu0 0.0
        %242 = vmatpush1.msra.mxu0 0.0
        %243 = vmatprep.subr.mxu0 0.0
        %244 = vmatpush1.msra.mxu0 0.0
        %245 = vmatprep.subr.mxu0 0.0
        %246 = vmatpush1.msra.mxu0 0.0
        %247 = vmatprep.mubr.f32.mxu0 0.0
        %248 = vmatmul.mubr.f32.gmra.mrb[0].mxu0 %v165
        %v249 = vpop.f32.mrb[0].mxu0
        %v250 = vadd.f32 0.0, %v249
        %v251 = vpop.f32.mrb[0].mxu0
        %252 = vmatprep.mubr.f32.mxu0 0.0
        %253 = vmatmul.mubr.f32.gmra.mrb[0].mxu0 %v166
        %v254 = vpop.f32.mrb[0].mxu0
        %v255 = vadd.f32 0.0, %v254
        %v256 = vpop.f32.mrb[0].mxu0
        %257 = vdwg.mxu0
        %vm258 = vcmask 261120
        %259 = vst.msk [vmem:[%s145] sm:$0xff] %vm258, %v250
        %260 = vst.msk [vmem:[%s145 + $0x8] sm:$0xff] %vm258, %v255
        %s261 = sand.u32 %s68, 1
        %s262 = sand.u32 %s68, 1
        %s263 = smul.addr %s262, 16
        %s264 = scalar_lea.vmem [#allocation2], %s263
        // Predicated region
        $region29: #{semantic_attention.3} parent=27 // pred_check
          %p265 = pneg %p78
        $region30: #{semantic_attention.3} parent=27 // pred_check_branch
          %267 = sbr.rel (%p265) target = $region32
        $region31: #{semantic_attention.3} parent=27 // pred_region
          %s268 = smul.u32 2, %s13
          %s269 = ssub.s32 5, %s268
          %p270 = scmp.lt.s32.totalorder %s269, 2
          %s271 = scalar_select %p270, %s269, 2
          %s272 = smul.u32 128, %s271
          %p273 = scmp.ne.s32.totalorder 0, %s272
          %s274 = smul.addr %s268, 8
          %s275 = scalar_lea.vmem %s2, %s274
          // Predicated region
          $region33: #{semantic_attention.3} parent=31 // pred_check
            %p276 = pneg %p273
          $region34: #{semantic_attention.3} parent=31 // pred_check_branch
            %278 = sbr.rel (%p276) target = $region36
          $region35: #{semantic_attention.3} parent=31 // pred_region
            // Predicated region
            $region37: #{semantic_attention.3} parent=35 // pred_check
              _
            $region38: #{semantic_attention.3} parent=35 // pred_check_branch
              %280 = sbr.rel (0) target = $region40
            $region39: #{semantic_attention.3} parent=35 // pred_region
              // Predicated region
              $region59: #{semantic_attention.3} parent=39 // pred_check
                _
              $region60: #{semantic_attention.3} parent=39 // pred_check_branch
                %331 = sbr.rel (0) target = $region62
              $region61: #{semantic_attention.3} parent=39 // pred_region
                %s332 = sshrl.u32 %s271, 1
                // While loop
                $region63: #{semantic_attention.3} parent=61 // loop_pre_header
                  _
                $region64: #{semantic_attention.3} parent=61 // loop_header
                  %s334 = sphi 0, %s336
                  %p335 = scmp.ge.s32.totalorder %s334, %s332
                  %s339 = sphi 0, %s348
                  %s340 = sphi %s264, %s351
                  %s341 = sphi %s275, %s352
                $region65: #{semantic_attention.3} parent=61 // loop_header_branch
                  %338 = sbr.rel (%p335) target = $region69
                $region66: #{semantic_attention.3} parent=61 // loop_body
                  %v342 = vld [vmem:[%s340] sm:$0xff]
                  %343 = vst [vmem:[%s341] sm:$0xff] %v342
                  %v344 = vld [vmem:[%s340 + $0x8] sm:$0xff]
                  %345 = vst [vmem:[%s341 + $0x8] sm:$0xff] %v344
                  %s346 = sadd.s32 1, %s339
                  %p347 = scmp.ge.s32.totalorder %s346, %s332
                  %s348 = scalar_select %p347, 0, %s346
                  %s349 = smul.u32 %s348, 16
                  %s350 = smul.u32 %s348, 16
                  %s351 = scalar_lea.vmem %s264, %s349 [#allocation2]
                  %s352 = scalar_lea.vmem %s275, %s350
                $region67: #{semantic_attention.3} parent=61 // loop_footer
                  %s336 = sadd.s32 %s334, 1
                $region68: #{semantic_attention.3} parent=61 // loop_footer_branch
                  %333 = sbr.rel target = $region64
                $region69: #{semantic_attention.3} parent=61 // loop_exit
                  _
                %s353 = sshrl.u32 %s271, 1
                %s354 = sand.u32 %s271, 1
                %s355 = smul.u32 %s353, 2
                %s356 = smul.u32 8, %s355
                %s357 = scalar_lea.vmem %s264, %s356 [#allocation2]
                %s358 = smul.u32 8, %s355
                %s359 = scalar_lea.vmem %s275, %s358
                // While loop
                $region70: #{semantic_attention.3} parent=61 // loop_pre_header
                  _
                $region71: #{semantic_attention.3} parent=61 // loop_header
                  %s361 = sphi 0, %s363
                  %p362 = scmp.ge.s32.totalorder %s361, %s354
                  %s366 = sphi 0, %s373
                  %s367 = sphi %s357, %s376
                  %s368 = sphi %s359, %s377
                $region72: #{semantic_attention.3} parent=61 // loop_header_branch
                  %365 = sbr.rel (%p362) target = $region76
                $region73: #{semantic_attention.3} parent=61 // loop_body
                  %v369 = vld [vmem:[%s367] sm:$0xff]
                  %370 = vst [vmem:[%s368] sm:$0xff] %v369
                  %s371 = sadd.s32 1, %s366
                  %p372 = scmp.ge.s32.totalorder %s371, %s354
                  %s373 = scalar_select %p372, 0, %s371
                  %s374 = smul.u32 %s373, 8
                  %s375 = smul.u32 %s373, 8
                  %s376 = scalar_lea.vmem %s357, %s374 [#allocation2]
                  %s377 = scalar_lea.vmem %s359, %s375
                $region74: #{semantic_attention.3} parent=61 // loop_footer
                  %s363 = sadd.s32 %s361, 1
                $region75: #{semantic_attention.3} parent=61 // loop_footer_branch
                  %360 = sbr.rel target = $region71
                $region76: #{semantic_attention.3} parent=61 // loop_exit
                  _
              $region62: #{semantic_attention.3} parent=39 // pred_fallthru
                _
              // Predicated region
              $region77: #{semantic_attention.3} parent=39 // pred_check
                _
              $region78: #{semantic_attention.3} parent=39 // pred_check_branch
                %379 = sbr.rel target = $region80
              $region79: #{semantic_attention.3} parent=39 // pred_region
                _
              $region80: #{semantic_attention.3} parent=39 // pred_fallthru
                _
            $region40: #{semantic_attention.3} parent=35 // pred_fallthru
              _
            // Predicated region
            $region41: #{semantic_attention.3} parent=35 // pred_check
              _
            $region42: #{semantic_attention.3} parent=35 // pred_check_branch
              %282 = sbr.rel target = $region44
            $region43: #{semantic_attention.3} parent=35 // pred_region
              %s284 = sshrl.u32 %s271, 1
              // While loop
              $region45: #{semantic_attention.3} parent=43 // loop_pre_header
                _
              $region46: #{semantic_attention.3} parent=43 // loop_header
                %s286 = sphi 0, %s288
                %p287 = scmp.ge.s32.totalorder %s286, %s284
                %s291 = sphi 0, %s300
                %s292 = sphi %s264, %s303
                %s293 = sphi %s275, %s304
              $region47: #{semantic_attention.3} parent=43 // loop_header_branch
                %290 = sbr.rel (%p287) target = $region51
              $region48: #{semantic_attention.3} parent=43 // loop_body
                %v294 = vld [vmem:[%s292] sm:$0xff]
                %295 = vst [vmem:[%s293] sm:$0xff] %v294
                %v296 = vld [vmem:[%s292 + $0x8] sm:$0xff]
                %297 = vst [vmem:[%s293 + $0x8] sm:$0xff] %v296
                %s298 = sadd.s32 1, %s291
                %p299 = scmp.ge.s32.totalorder %s298, %s284
                %s300 = scalar_select %p299, 0, %s298
                %s301 = smul.u32 %s300, 16
                %s302 = smul.u32 %s300, 16
                %s303 = scalar_lea.vmem %s264, %s301 [#allocation2]
                %s304 = scalar_lea.vmem %s275, %s302
              $region49: #{semantic_attention.3} parent=43 // loop_footer
                %s288 = sadd.s32 %s286, 1
              $region50: #{semantic_attention.3} parent=43 // loop_footer_branch
                %285 = sbr.rel target = $region46
              $region51: #{semantic_attention.3} parent=43 // loop_exit
                _
              %s305 = sshrl.u32 %s271, 1
              %s306 = sand.u32 %s271, 1
              %s307 = smul.u32 %s305, 2
              %s308 = smul.u32 8, %s307
              %s309 = scalar_lea.vmem %s264, %s308 [#allocation2]
              %s310 = smul.u32 8, %s307
              %s311 = scalar_lea.vmem %s275, %s310
              // While loop
              $region52: #{semantic_attention.3} parent=43 // loop_pre_header
                _
              $region53: #{semantic_attention.3} parent=43 // loop_header
                %s313 = sphi 0, %s315
                %p314 = scmp.ge.s32.totalorder %s313, %s306
                %s318 = sphi 0, %s325
                %s319 = sphi %s309, %s328
                %s320 = sphi %s311, %s329
              $region54: #{semantic_attention.3} parent=43 // loop_header_branch
                %317 = sbr.rel (%p314) target = $region58
              $region55: #{semantic_attention.3} parent=43 // loop_body
                %v321 = vld [vmem:[%s319] sm:$0xff]
                %322 = vst [vmem:[%s320] sm:$0xff] %v321
                %s323 = sadd.s32 1, %s318
                %p324 = scmp.ge.s32.totalorder %s323, %s306
                %s325 = scalar_select %p324, 0, %s323
                %s326 = smul.u32 %s325, 8
                %s327 = smul.u32 %s325, 8
                %s328 = scalar_lea.vmem %s309, %s326 [#allocation2]
                %s329 = scalar_lea.vmem %s311, %s327
              $region56: #{semantic_attention.3} parent=43 // loop_footer
                %s315 = sadd.s32 %s313, 1
              $region57: #{semantic_attention.3} parent=43 // loop_footer_branch
                %312 = sbr.rel target = $region53
              $region58: #{semantic_attention.3} parent=43 // loop_exit
                _
            $region44: #{semantic_attention.3} parent=35 // pred_fallthru
              _
          $region36: #{semantic_attention.3} parent=31 // pred_fallthru
            _
          %380 = vnop
        $region32: #{semantic_attention.3} parent=27 // pred_fallthru
          _
      $region28: #{semantic_attention.3} parent=5 // pred_fallthru
        _
      %p381 = scmp.le.s32.totalorder 2, %s8
      // Predicated region
      $region81: #{semantic_attention.3} parent=5 // pred_check
        %p382 = pneg %p381
      $region82: #{semantic_attention.3} parent=5 // pred_check_branch
        %384 = sbr.rel (%p382) target = $region84
      $region83: #{semantic_attention.3} parent=5 // pred_region
        %s385 = ssub.s32 %s8, 2
        // Predicated region
        $region85: #{semantic_attention.3} parent=83 // pred_check
          %p386 = pneg %p84
        $region86: #{semantic_attention.3} parent=83 // pred_check_branch
          %388 = sbr.rel (%p386) target = $region88
        $region87: #{semantic_attention.3} parent=83 // pred_region
          %s389 = sand.u32 %s69, 1
          %s390 = sand.u32 %s69, 1
          %s391 = smul.addr %s390, 16
          %s392 = scalar_lea.vmem [#allocation2], %s391
        $region88: #{semantic_attention.3} parent=83 // pred_fallthru
          _
      $region84: #{semantic_attention.3} parent=5 // pred_fallthru
        _
    $region6: #{semantic_attention.3} parent=1 // loop_footer
      %s12 = sadd.s32 1, %s8
    $region7: #{semantic_attention.3} parent=1 // loop_footer_branch
      %7 = sbr.rel target = $region3
    $region8: #{semantic_attention.3} parent=1 // loop_exit
      _

// kernel: semantic_attention.2
$region0: #{semantic_attention.2}
  #allocation0 [shape = 'u32[]', space=smem, size = 0x4, offset = 0x4, fixed_abs, tag = 'smem constant byte address 0x4 - core index']
  #allocation1 [shape = 'u32[144,128]{1,0:T(1,128)}', space=vmem, size = 0x12000, scoped, tag = 'internal scratch']
  %s0 = inlined_call_operand.vmem [shape: f32[40,128], index: 0, kind: input, shape index: {}]
  %s1 = inlined_call_operand.vmem [shape: f32[128,256], index: 1, kind: input, shape index: {}]
  %s2 = inlined_call_operand.vmem [shape: f32[1,256], index: 2, kind: input, shape index: {}]
  %s3 = inlined_call_operand.vmem [shape: f32[256,4], index: 3, kind: input, shape index: {}]
  %s4 = inlined_call_operand.vmem [shape: f32[16,4], index: 4, kind: output, shape index: {}]
  %s5 = sld [smem:[#allocation0]]
  $region53: #{semantic_attention.2} parent=0
    _
  %s7 = ssub.s32 1, %s5
  %s8 = scalar_select 0, %s7, %s5
  loop: start=0, step=1, limit=6
  $region2: #{semantic_attention.2} parent=0 // loop_pre_header
    _
  $region3: #{semantic_attention.2} parent=0 // loop_header
    %s10 = sphi 0, %s14
    %p11 = scmp.ge.s32.totalorder %s10, 6
    %s17 = sphi 0, %s29
    %s18 = sphi 0, %s25
    %s19 = sphi 0, %s17
    %s20 = sphi 0, %s18
    %s21 = sphi 0, %s19
    %s22 = sphi 0, %s20
    %s40 = sphi 0, %s42
    %s43 = sphi 0, %s40
    %s44 = sphi 0, %s43
    %s60 = sphi 0, %s44
    %s64 = sphi 0, %s64
    %s66 = sphi 0, %s64
    %s67 = sphi 0, %s66
    %s81 = sphi 0, %s67
    %s85 = sphi 0, %s85
    %s87 = sphi 0, %s85
    %s88 = sphi 0, %s87
    %s102 = sphi 0, %s88
    %s106 = sphi 0, %s106
    %s108 = sphi 0, %s106
    %s109 = sphi 0, %s108
    %s123 = sphi 0, %s109
    %s129 = sphi 0, %s131
    %s132 = sphi 0, %s129
    %s133 = sphi 0, %s132
    %s149 = sphi 0, %s133
  $region4: #{semantic_attention.2} parent=0 // loop_header_branch
    %13 = sbr.rel (%p11) target = $region8
  $region5: #{semantic_attention.2} parent=0 // loop_body
    %s15 = ssub.s32 %s10, 1
    %s16 = ssub.s32 %s10, 2
    %s23 = sadd.s32 1, %s18
    %p24 = scmp.ge.s32.totalorder %s23, 2
    %s25 = scalar_select %p24, 0, %s23
    %s26 = sadd.s32 1, %s17
    %s27 = scalar_select %p24, %s26, %s17
    %p28 = scmp.ge.s32.totalorder %s27, 2
    %s29 = scalar_select %p28, 0, %s27
    %s30 = smul.u32 %s17, 2
    %s31 = sadd.s32 %s30, %s18
    %p32 = scmp.lt.s32.totalorder %s31, 2
    %s33 = scalar_select %p32, %s31, 2
    %s34 = smul.u32 %s29, 2
    %s35 = sadd.s32 %s34, %s25
    %p36 = scmp.lt.s32.totalorder %s35, 2
    %s37 = scalar_select %p36, %s35, 2
    %s38 = ssub.s32 %s33, %s37
    %p39 = scmp.eq.s32.totalorder %s38, 0
    %s41 = sadd.s32 %s40, 1
    %s42 = scalar_select %p39, %s40, %s41
    %p45 = pneg %p39
    %p46 = scmp.eq.s32.totalorder %s10, 3
    %p47 = por %p45, %p46
    %p48 = scmp.ne.s32.totalorder %s40, %s43
    %p49 = scmp.eq.s32.totalorder %s10, 0
    %p50 = por %p48, %p49
    %p51 = scmp.ne.s32.totalorder %s40, %s43
    %p52 = scmp.eq.s32.totalorder %s15, 3
    %p53 = por %p51, %p52
    %p54 = scmp.ne.s32.totalorder %s43, %s44
    %p55 = scmp.eq.s32.totalorder %s15, 0
    %p56 = por %p54, %p55
    %p57 = scmp.ne.s32.totalorder %s43, %s44
    %p58 = scmp.eq.s32.totalorder %s16, 3
    %p59 = por %p57, %p58
    %p61 = scmp.ne.s32.totalorder %s44, %s60
    %p62 = scmp.eq.s32.totalorder %s16, 0
    %p63 = por %p61, %p62
    %s65 = sadd.s32 %s64, 1
    %p68 = scmp.eq.s32.totalorder %s10, 3
    %p69 = scmp.ne.s32.totalorder %s64, %s66
    %p70 = scmp.eq.s32.totalorder %s10, 0
    %p71 = por %p69, %p70
    %p72 = scmp.ne.s32.totalorder %s64, %s66
    %p73 = scmp.eq.s32.totalorder %s15, 3
    %p74 = por %p72, %p73
    %p75 = scmp.ne.s32.totalorder %s66, %s67
    %p76 = scmp.eq.s32.totalorder %s15, 0
    %p77 = por %p75, %p76
    %p78 = scmp.ne.s32.totalorder %s66, %s67
    %p79 = scmp.eq.s32.totalorder %s16, 3
    %p80 = por %p78, %p79
    %p82 = scmp.ne.s32.totalorder %s67, %s81
    %p83 = scmp.eq.s32.totalorder %s16, 0
    %p84 = por %p82, %p83
    %s86 = sadd.s32 %s85, 1
    %p89 = scmp.eq.s32.totalorder %s10, 3
    %p90 = scmp.ne.s32.totalorder %s85, %s87
    %p91 = scmp.eq.s32.totalorder %s10, 0
    %p92 = por %p90, %p91
    %p93 = scmp.ne.s32.totalorder %s85, %s87
    %p94 = scmp.eq.s32.totalorder %s15, 3
    %p95 = por %p93, %p94
    %p96 = scmp.ne.s32.totalorder %s87, %s88
    %p97 = scmp.eq.s32.totalorder %s15, 0
    %p98 = por %p96, %p97
    %p99 = scmp.ne.s32.totalorder %s87, %s88
    %p100 = scmp.eq.s32.totalorder %s16, 3
    %p101 = por %p99, %p100
    %p103 = scmp.ne.s32.totalorder %s88, %s102
    %p104 = scmp.eq.s32.totalorder %s16, 0
    %p105 = por %p103, %p104
    %s107 = sadd.s32 %s106, 1
    %p110 = scmp.eq.s32.totalorder %s10, 3
    %p111 = scmp.ne.s32.totalorder %s106, %s108
    %p112 = scmp.eq.s32.totalorder %s10, 0
    %p113 = por %p111, %p112
    %p114 = scmp.ne.s32.totalorder %s106, %s108
    %p115 = scmp.eq.s32.totalorder %s15, 3
    %p116 = por %p114, %p115
    %p117 = scmp.ne.s32.totalorder %s108, %s109
    %p118 = scmp.eq.s32.totalorder %s15, 0
    %p119 = por %p117, %p118
    %p120 = scmp.ne.s32.totalorder %s108, %s109
    %p121 = scmp.eq.s32.totalorder %s16, 3
    %p122 = por %p120, %p121
    %p124 = scmp.ne.s32.totalorder %s109, %s123
    %p125 = scmp.eq.s32.totalorder %s16, 0
    %p126 = por %p124, %p125
    %s127 = ssub.s32 %s17, %s29
    %p128 = scmp.eq.s32.totalorder %s127, 0
    %s130 = sadd.s32 %s129, 1
    %s131 = scalar_select %p128, %s129, %s130
    %p134 = pneg %p128
    %p135 = scmp.eq.s32.totalorder %s10, 3
    %p136 = por %p134, %p135
    %p137 = scmp.ne.s32.totalorder %s129, %s132
    %p138 = scmp.eq.s32.totalorder %s10, 0
    %p139 = por %p137, %p138
    %p140 = scmp.ne.s32.totalorder %s129, %s132
    %p141 = scmp.eq.s32.totalorder %s15, 3
    %p142 = por %p140, %p141
    %p143 = scmp.ne.s32.totalorder %s132, %s133
    %p144 = scmp.eq.s32.totalorder %s15, 0
    %p145 = por %p143, %p144
    %p146 = scmp.ne.s32.totalorder %s132, %s133
    %p147 = scmp.eq.s32.totalorder %s16, 3
    %p148 = por %p146, %p147
    %p150 = scmp.ne.s32.totalorder %s133, %s149
    %p151 = scmp.eq.s32.totalorder %s16, 0
    %p152 = por %p150, %p151
    %p153 = scmp.le.s32.totalorder 1, %s10
    %p154 = scmp.lt.s32.totalorder %s10, 5
    %p155 = pnand %p153, %p154
    %p156 = pneg %p155
    // Predicated region
    $region9: #{semantic_attention.2} parent=5 // pred_check
      _
    $region10: #{semantic_attention.2} parent=5 // pred_check_branch
      %158 = sbr.rel (%p155) target = $region12
    $region11: #{semantic_attention.2} parent=5 // pred_region
      %s159 = ssub.s32 %s10, 1
      // Predicated region
      $region13: #{semantic_attention.2} parent=11 // pred_check
        %p160 = pneg %p77
      $region14: #{semantic_attention.2} parent=11 // pred_check_branch
        %162 = sbr.rel (%p160) target = $region16
      $region15: #{semantic_attention.2} parent=11 // pred_region
        _
      $region16: #{semantic_attention.2} parent=11 // pred_fallthru
        _
      // Predicated region
      $region17: #{semantic_attention.2} parent=11 // pred_check
        %p163 = pneg %p98
      $region18: #{semantic_attention.2} parent=11 // pred_check_branch
        %165 = sbr.rel (%p163) target = $region20
      $region19: #{semantic_attention.2} parent=11 // pred_region
        _
      $region20: #{semantic_attention.2} parent=11 // pred_fallthru
        _
      // Predicated region
      $region21: #{semantic_attention.2} parent=11 // pred_check
        %p166 = pneg %p119
      $region22: #{semantic_attention.2} parent=11 // pred_check_branch
        %168 = sbr.rel (%p166) target = $region24
      $region23: #{semantic_attention.2} parent=11 // pred_region
        _
      $region24: #{semantic_attention.2} parent=11 // pred_fallthru
        _
    $region12: #{semantic_attention.2} parent=5 // pred_fallthru
      _
    %p169 = scmp.lt.s32.totalorder %s10, 4
    // Predicated region
    $region25: #{semantic_attention.2} parent=5 // pred_check
      %p170 = pneg %p169
    $region26: #{semantic_attention.2} parent=5 // pred_check_branch
      %172 = sbr.rel (%p170) target = $region28
    $region27: #{semantic_attention.2} parent=5 // pred_region
      // Predicated region
      $region29: #{semantic_attention.2} parent=27 // pred_check
        %p173 = pneg %p50
      $region30: #{semantic_attention.2} parent=27 // pred_check_branch
        %175 = sbr.rel (%p173) target = $region32
      $region31: #{semantic_attention.2} parent=27 // pred_region
        %s176 = smul.u32 %s17, 2
        %s177 = sadd.s32 %s176, %s18
        %p178 = scmp.lt.s32.totalorder %s177, 2
        %s179 = scalar_select %p178, %s177, 2
        %s180 = smul.u32 2, %s179
        %s181 = ssub.s32 5, %s180
        %p182 = scmp.lt.s32.totalorder %s181, 2
        %s183 = scalar_select %p182, %s181, 2
        %s184 = smul.u32 128, %s183
        %p185 = scmp.lt.s32.totalorder %s180, 4
        %s186 = scalar_select %p185, %s180, 4
        %s187 = smul.addr %s186, 8
        %s188 = scalar_lea.vmem %s0, %s187
        %s189 = smul.u32 %s17, 2
        %s190 = sadd.s32 %s189, %s18
        %p191 = scmp.lt.s32.totalorder %s190, 2
        %s192 = scalar_select %p191, %s190, 2
        %s193 = smul.u32 2, %s192
        %s194 = ssub.s32 5, %s193
        %p195 = scmp.lt.s32.totalorder %s194, 2
        %s196 = scalar_select %p195, %s194, 2
        %s197 = smul.u32 128, %s196
      $region32: #{semantic_attention.2} parent=27 // pred_fallthru
        _
    $region28: #{semantic_attention.2} parent=5 // pred_fallthru
      _
    %p198 = scmp.le.s32.totalorder 1, %s10
    %p199 = scmp.lt.s32.totalorder %s10, 5
    %p200 = pnand %p198, %p199
    %p201 = pneg %p200
    // Predicated region
    $region33: #{semantic_attention.2} parent=5 // pred_check
      _
    $region34: #{semantic_attention.2} parent=5 // pred_check_branch
      %203 = sbr.rel (%p200) target = $region36
    $region35: #{semantic_attention.2} parent=5 // pred_region
      %s204 = ssub.s32 %s10, 1
      %s205 = smul.u32 %s19, 2
      %s206 = sadd.s32 %s205, %s20
      %p207 = scmp.lt.s32.totalorder %s206, 2
      %s208 = scalar_select %p207, %s206, 2
      %s209 = smul.u32 2, %s208
      %s210 = ssub.s32 5, %s209
      %p211 = scmp.lt.s32.totalorder %s210, 2
      %s212 = scalar_select %p211, %s210, 2
      %s213 = smul.u32 128, %s212
      %p214 = scmp.lt.s32.totalorder %s209, 4
      %s215 = scalar_select %p214, %s209, 4
      %s216 = smul.addr %s215, 8
      %s217 = scalar_lea.vmem %s0, %s216
      %p218 = pneg %p56
      %p219 = pneg %p53
      %p220 = pneg %p77
      %p221 = pneg %p74
      %p222 = pneg %p98
      %p223 = pneg %p95
      %p224 = pneg %p119
      %p225 = pneg %p116
      %p226 = pneg %p145
      %p227 = pneg %p142
      %p228 = scmp.lt.s32.totalorder %s19, 1
      %s229 = scalar_select %p228, %s19, 1
      %s230 = smul.addr %s229, 8
      %s231 = scalar_lea.vmem %s4, %s230
      %s232 = smul.u32 %s19, 2
      %s233 = sadd.s32 %s232, %s20
      %p234 = scmp.lt.s32.totalorder %s233, 2
      %s235 = scalar_select %p234, %s233, 2
      %s236 = smul.u32 2, %s235
      %s237 = ssub.s32 5, %s236
      %p238 = scmp.lt.s32.totalorder %s237, 2
      %s239 = scalar_select %p238, %s237, 2
      %s240 = smul.u32 128, %s239
      %p241 = scmp.lt.s32.totalorder %s236, 4
      %s242 = scalar_select %p241, %s236, 4
      %s243 = smul.addr %s242, 8
      %s244 = scalar_lea.vmem %s0, %s243
      %s245 = smul.u32 %s19, 2
      %s246 = sadd.s32 %s245, %s20
      %p247 = scmp.lt.s32.totalorder %s246, 2
      %s248 = scalar_select %p247, %s246, 2
      %s249 = smul.u32 2, %s248
      %s250 = ssub.s32 5, %s249
      %p251 = scmp.lt.s32.totalorder %s250, 2
      %s252 = scalar_select %p251, %s250, 2
      %s253 = smul.u32 128, %s252
      %p254 = scmp.lt.s32.totalorder %s19, 1
      %s255 = scalar_select %p254, %s19, 1
      %s256 = smul.addr %s255, 8
      %s257 = scalar_lea.vmem %s4, %s256
      %p258 = scmp.eq.s32.totalorder %s20, 0
      // Predicated region
      $region37: #{semantic_attention.2} parent=35 // pred_check
        %p259 = pneg %p258
      $region38: #{semantic_attention.2} parent=35 // pred_check_branch
        %261 = sbr.rel (%p259) target = $region40
      $region39: #{semantic_attention.2} parent=35 // pred_region
        %vm262 = vcmask 31744
        %263 = vst.msk [vmem:[%s257] sm:$0xff] %vm262, 0.0
      $region40: #{semantic_attention.2} parent=35 // pred_fallthru
        _
      %s264 = smul.u32 %s19, 2
      %s265 = sadd.s32 %s264, %s20
      %s266 = smul.u32 %s265, 16
      %v267 = vlaneseq
      %v268 = vshrl.u32 %v267, 7
      %v269 = vadd.s32 %v268, 8
      %v270 = vstv %s266
      %v271 = vadd.s32 %v270, %v268
      %v272 = vadd.s32 %v270, %v269
      %vm273 = vcmp.lt.s32.totalorder %v271, 40
      %vm274 = vcmp.lt.s32.totalorder %v272, 40
      %v275 = vld [vmem:[%s244] sm:$0xff]
      %v276 = vld [vmem:[%s244 + $0x8] sm:$0xff]
      %v277 = vld [vmem:[%s1] sm:$0xff]
      %v278 = vld [vmem:[%s1 + $0x8] sm:$0xff]
      %v279 = vld [vmem:[%s1 + $0x10] sm:$0xff]
      %v280 = vld [vmem:[%s1 + $0x18] sm:$0xff]
      %v281 = vld [vmem:[%s1 + $0x20] sm:$0xff]
      %v282 = vld [vmem:[%s1 + $0x28] sm:$0xff]
      %v283 = vld [vmem:[%s1 + $0x30] sm:$0xff]
      %v284 = vld [vmem:[%s1 + $0x38] sm:$0xff]
      %v285 = vld [vmem:[%s1 + $0x40] sm:$0xff]
      %v286 = vld [vmem:[%s1 + $0x48] sm:$0xff]
      %v287 = vld [vmem:[%s1 + $0x50] sm:$0xff]
      %v288 = vld [vmem:[%s1 + $0x58] sm:$0xff]
      %v289 = vld [vmem:[%s1 + $0x60] sm:$0xff]
      %v290 = vld [vmem:[%s1 + $0x68] sm:$0xff]
      %v291 = vld [vmem:[%s1 + $0x70] sm:$0xff]
      %v292 = vld [vmem:[%s1 + $0x78] sm:$0xff]
      %v293 = vld [vmem:[%s1 + $0x80] sm:$0xff]
      %v294 = vld [vmem:[%s1 + $0x88] sm:$0xff]
      %v295 = vld [vmem:[%s1 + $0x90] sm:$0xff]
      %v296 = vld [vmem:[%s1 + $0x98] sm:$0xff]
      %v297 = vld [vmem:[%s1 + $0xa0] sm:$0xff]
      %v298 = vld [vmem:[%s1 + $0xa8] sm:$0xff]
      %v299 = vld [vmem:[%s1 + $0xb0] sm:$0xff]
      %v300 = vld [vmem:[%s1 + $0xb8] sm:$0xff]
      %v301 = vld [vmem:[%s1 + $0xc0] sm:$0xff]
      %v302 = vld [vmem:[%s1 + $0xc8] sm:$0xff]
      %v303 = vld [vmem:[%s1 + $0xd0] sm:$0xff]
      %v304 = vld [vmem:[%s1 + $0xd8] sm:$0xff]
      %v305 = vld [vmem:[%s1 + $0xe0] sm:$0xff]
      %v306 = vld [vmem:[%s1 + $0xe8] sm:$0xff]
      %v307 = vld [vmem:[%s1 + $0xf0] sm:$0xff]
      %v308 = vld [vmem:[%s1 + $0xf8] sm:$0xff]
      %v309 = vld [vmem:[%s2] sm:$0x3]
      %v311 = vlaneseq
      %v312 = vshrl.u32 %v311, 7
      %v313 = vsub.s32 0, %v312
      %v314 = vrot.slane %v309, %v313
      %v315 = vlaneseq
      %v316 = vshrl.u32 %v315, 7
      %v317 = vsub.s32 1, %v316
      %v318 = vrot.slane %v309, %v317
      %321 = vmatprep.subr.mxu0 %v278
      %322 = vmatpush1.msra.mxu0 %v277
      %323 = vmatprep.subr.mxu0 %v280
      %324 = vmatpush1.msra.mxu0 %v279
      %325 = vmatprep.subr.mxu0 %v282
      %326 = vmatpush1.msra.mxu0 %v281
      %327 = vmatprep.subr.mxu0 %v284
      %328 = vmatpush1.msra.mxu0 %v283
      %329 = vmatprep.subr.mxu0 %v286
      %330 = vmatpush1.msra.mxu0 %v285
      %331 = vmatprep.subr.mxu0 %v288
      %332 = vmatpush1.msra.mxu0 %v287
      %333 = vmatprep.subr.mxu0 %v290
      %334 = vmatpush1.msra.mxu0 %v289
      %335 = vmatprep.subr.mxu0 %v292
      %336 = vmatpush1.msra.mxu0 %v291
      %337 = vmatprep.subr.mxu0 %v294
      %338 = vmatpush1.msra.mxu0 %v293
      %339 = vmatprep.subr.mxu0 %v296
      %340 = vmatpush1.msra.mxu0 %v295
      %341 = vmatprep.subr.mxu0 %v298
      %342 = vmatpush1.msra.mxu0 %v297
      %343 = vmatprep.subr.mxu0 %v300
      %344 = vmatpush1.msra.mxu0 %v299
      %345 = vmatprep.subr.mxu0 %v302
      %346 = vmatpush1.msra.mxu0 %v301
      %347 = vmatprep.subr.mxu0 %v304
      %348 = vmatpush1.msra.mxu0 %v303
      %349 = vmatprep.subr.mxu0 %v306
      %350 = vmatpush1.msra.mxu0 %v305
      %351 = vmatprep.subr.mxu0 %v308
      %352 = vmatpush1.msra.mxu0 %v307
      %353 = vmatprep.subr.mxu0 0.0
      %354 = vmatpush1.msra.mxu0 0.0
      %355 = vmatprep.subr.mxu0 0.0
      %356 = vmatpush1.msra.mxu0 0.0
      %357 = vmatprep.subr.mxu0 0.0
      %358 = vmatpush1.msra.mxu0 0.0
      %359 = vmatprep.subr.mxu0 0.0
      %360 = vmatpush1.msra.mxu0 0.0
      %361 = vmatprep.subr.mxu0 0.0
      %362 = vmatpush1.msra.mxu0 0.0
      %363 = vmatprep.subr.mxu0 0.0
      %364 = vmatpush1.msra.mxu0 0.0
      %365 = vmatprep.subr.mxu0 0.0
      %366 = vmatpush1.msra.mxu0 0.0
      %367 = vmatprep.subr.mxu0 0.0
      %368 = vmatpush1.msra.mxu0 0.0
      %369 = vmatprep.subr.mxu0 0.0
      %370 = vmatpush1.msra.mxu0 0.0
      %371 = vmatprep.subr.mxu0 0.0
      %372 = vmatpush1.msra.mxu0 0.0
      %373 = vmatprep.subr.mxu0 0.0
      %374 = vmatpush1.msra.mxu0 0.0
      %375 = vmatprep.subr.mxu0 0.0
      %376 = vmatpush1.msra.mxu0 0.0
      %377 = vmatprep.subr.mxu0 0.0
      %378 = vmatpush1.msra.mxu0 0.0
      %379 = vmatprep.subr.mxu0 0.0
      %380 = vmatpush1.msra.mxu0 0.0
      %381 = vmatprep.subr.mxu0 0.0
      %382 = vmatpush1.msra.mxu0 0.0
      %383 = vmatprep.subr.mxu0 0.0
      %384 = vmatpush1.msra.mxu0 0.0
      %385 = vmatprep.mubr.f32.mxu0 0.0
      %386 = vmatmul.mubr.f32.gmra.mrb[0].mxu0 %v275
      %v387 = vpop.f32.mrb[0].mxu0
      %v388 = vadd.f32 %v314, %v387
      %v389 = vpop.f32.mrb[0].mxu0
      %v390 = vadd.f32 %v318, %v389
      %391 = vmatprep.mubr.f32.mxu0 0.0
      %392 = vmatmul.mubr.f32.gmra.mrb[0].mxu0 %v276
      %v393 = vpop.f32.mrb[0].mxu0
      %v394 = vadd.f32 %v314, %v393
      %v395 = vpop.f32.mrb[0].mxu0
      %v396 = vadd.f32 %v318, %v395
      %397 = vdwg.mxu0
      %v398 = vtanh.pop %v388
      %v399 = vtanh.pop %v390
      %v400 = vtanh.pop %v394
      %v401 = vtanh.pop %v396
      %v402 = vld [vmem:[%s3] sm:$0xff]
      %v403 = vld [vmem:[%s3 + $0x8] sm:$0xff]
      %v404 = vld [vmem:[%s3 + $0x10] sm:$0xff]
      %v405 = vld [vmem:[%s3 + $0x18] sm:$0xff]
      %v406 = vld [vmem:[%s3 + $0x20] sm:$0xff]
      %v407 = vld [vmem:[%s3 + $0x28] sm:$0xff]
      %v408 = vld [vmem:[%s3 + $0x30] sm:$0xff]
      %v409 = vld [vmem:[%s3 + $0x38] sm:$0xff]
      %v410 = vld [vmem:[%s3 + $0x40] sm:$0xff]
      %v411 = vld [vmem:[%s3 + $0x48] sm:$0xff]
      %v412 = vld [vmem:[%s3 + $0x50] sm:$0xff]
      %v413 = vld [vmem:[%s3 + $0x58] sm:$0xff]
      %v414 = vld [vmem:[%s3 + $0x60] sm:$0xff]
      %v415 = vld [vmem:[%s3 + $0x68] sm:$0xff]
      %v416 = vld [vmem:[%s3 + $0x70] sm:$0xff]
      %v417 = vld [vmem:[%s3 + $0x78] sm:$0xff]
      %v418 = vld [vmem:[%s3 + $0x80] sm:$0xff]
      %v419 = vld [vmem:[%s3 + $0x88] sm:$0xff]
      %v420 = vld [vmem:[%s3 + $0x90] sm:$0xff]
      %v421 = vld [vmem:[%s3 + $0x98] sm:$0xff]
      %v422 = vld [vmem:[%s3 + $0xa0] sm:$0xff]
      %v423 = vld [vmem:[%s3 + $0xa8] sm:$0xff]
      %v424 = vld [vmem:[%s3 + $0xb0] sm:$0xff]
      %v425 = vld [vmem:[%s3 + $0xb8] sm:$0xff]
      %v426 = vld [vmem:[%s3 + $0xc0] sm:$0xff]
      %v427 = vld [vmem:[%s3 + $0xc8] sm:$0xff]
      %v428 = vld [vmem:[%s3 + $0xd0] sm:$0xff]
      %v429 = vld [vmem:[%s3 + $0xd8] sm:$0xff]
      %v430 = vld [vmem:[%s3 + $0xe0] sm:$0xff]
      %v431 = vld [vmem:[%s3 + $0xe8] sm:$0xff]
      %v432 = vld [vmem:[%s3 + $0xf0] sm:$0xff]
      %v433 = vld [vmem:[%s3 + $0xf8] sm:$0xff]
      %434 = vmatprep.subr.mxu0 0.0
      %435 = vmatpush1.msra.mxu0 %v402
      %436 = vmatprep.subr.mxu0 0.0
      %437 = vmatpush1.msra.mxu0 %v403
      %438 = vmatprep.subr.mxu0 0.0
      %439 = vmatpush1.msra.mxu0 %v404
      %440 = vmatprep.subr.mxu0 0.0
      %441 = vmatpush1.msra.mxu0 %v405
      %442 = vmatprep.subr.mxu0 0.0
      %443 = vmatpush1.msra.mxu0 %v406
      %444 = vmatprep.subr.mxu0 0.0
      %445 = vmatpush1.msra.mxu0 %v407
      %446 = vmatprep.subr.mxu0 0.0
      %447 = vmatpush1.msra.mxu0 %v408
      %448 = vmatprep.subr.mxu0 0.0
      %449 = vmatpush1.msra.mxu0 %v409
      %450 = vmatprep.subr.mxu0 0.0
      %451 = vmatpush1.msra.mxu0 %v410
      %452 = vmatprep.subr.mxu0 0.0
      %453 = vmatpush1.msra.mxu0 %v411
      %454 = vmatprep.subr.mxu0 0.0
      %455 = vmatpush1.msra.mxu0 %v412
      %456 = vmatprep.subr.mxu0 0.0
      %457 = vmatpush1.msra.mxu0 %v413
      %458 = vmatprep.subr.mxu0 0.0
      %459 = vmatpush1.msra.mxu0 %v414
      %460 = vmatprep.subr.mxu0 0.0
      %461 = vmatpush1.msra.mxu0 %v415
      %462 = vmatprep.subr.mxu0 0.0
      %463 = vmatpush1.msra.mxu0 %v416
      %464 = vmatprep.subr.mxu0 0.0
      %465 = vmatpush1.msra.mxu0 %v417
      %466 = vmatprep.subr.mxu0 0.0
      %467 = vmatpush1.msra.mxu0 %v418
      %468 = vmatprep.subr.mxu0 0.0
      %469 = vmatpush1.msra.mxu0 %v419
      %470 = vmatprep.subr.mxu0 0.0
      %471 = vmatpush1.msra.mxu0 %v420
      %472 = vmatprep.subr.mxu0 0.0
      %473 = vmatpush1.msra.mxu0 %v421
      %474 = vmatprep.subr.mxu0 0.0
      %475 = vmatpush1.msra.mxu0 %v422
      %476 = vmatprep.subr.mxu0 0.0
      %477 = vmatpush1.msra.mxu0 %v423
      %478 = vmatprep.subr.mxu0 0.0
      %479 = vmatpush1.msra.mxu0 %v424
      %480 = vmatprep.subr.mxu0 0.0
      %481 = vmatpush1.msra.mxu0 %v425
      %482 = vmatprep.subr.mxu0 0.0
      %483 = vmatpush1.msra.mxu0 %v426
      %484 = vmatprep.subr.mxu0 0.0
      %485 = vmatpush1.msra.mxu0 %v427
      %486 = vmatprep.subr.mxu0 0.0
      %487 = vmatpush1.msra.mxu0 %v428
      %488 = vmatprep.subr.mxu0 0.0
      %489 = vmatpush1.msra.mxu0 %v429
      %490 = vmatprep.subr.mxu0 0.0
      %491 = vmatpush1.msra.mxu0 %v430
      %492 = vmatprep.subr.mxu0 0.0
      %493 = vmatpush1.msra.mxu0 %v431
      %494 = vmatprep.subr.mxu0 0.0
      %495 = vmatpush1.msra.mxu0 %v432
      %496 = vmatprep.subr.mxu0 0.0
      %497 = vmatpush1.msra.mxu0 %v433
      %498 = vmatprep.mubr.f32.mxu0 %v399
      %499 = vmatmul.mubr.f32.gmra.mrb[0].mxu0 %v398
      %v500 = vpop.f32.mrb[0].mxu0
      %v501 = vadd.f32 0.0, %v500
      %v502 = vpop.f32.mrb[0].mxu0
      %503 = vmatprep.mubr.f32.mxu0 %v401
      %504 = vmatmul.mubr.f32.gmra.mrb[0].mxu0 %v400
      %v505 = vpop.f32.mrb[0].mxu0
      %v506 = vadd.f32 0.0, %v505
      %v507 = vpop.f32.mrb[0].mxu0
      %508 = vdwg.mxu0
      %v509 = vsel %vm273, 1, 0
      %v510 = vsel %vm274, 1, 0
      %vm511 = vcmp.eq.s32.totalorder %v509, 1
      %vm512 = vcmp.eq.s32.totalorder %v510, 1
      %v513 = vsel %vm511, %v501, 0.0
      %v514 = vsel %vm512, %v506, 0.0
      %vm515 = vcmask 31744
      %v516 = vsel %vm515, %v513, 0.0
      %v517 = vsel %vm515, %v514, 0.0
      %v518 = vadd.f32 %v516, %v517
      %v519 = vrot.slane %v518, 4
      %v520 = vadd.f32 %v518, %v519
      %v521 = vrot.slane %v520, 2
      %v522 = vadd.f32 %v520, %v521
      %v523 = vrot.slane %v522, 1
      %v524 = vadd.f32 %v522, %v523
      %v525 = vld [vmem:[%s257] sm:$0xff]
      %v526 = vadd.f32 %v525, %v524
      %527 = vst.msk [vmem:[%s257] sm:$0xff] %vm515, %v526
      %p528 = scmp.lt.s32.totalorder %s19, 1
      %s529 = scalar_select %p528, %s19, 1
      %s530 = smul.addr %s529, 8
      %s531 = scalar_lea.vmem %s4, %s530
      // Predicated region
      $region41: #{semantic_attention.2} parent=35 // pred_check
        %p532 = pneg %p142
      $region42: #{semantic_attention.2} parent=35 // pred_check_branch
        %534 = sbr.rel (%p532) target = $region44
      $region43: #{semantic_attention.2} parent=35 // pred_region
        _
      $region44: #{semantic_attention.2} parent=35 // pred_fallthru
        _
    $region36: #{semantic_attention.2} parent=5 // pred_fallthru
      _
    %p535 = scmp.le.s32.totalorder 2, %s10
    // Predicated region
    $region45: #{semantic_attention.2} parent=5 // pred_check
      %p536 = pneg %p535
    $region46: #{semantic_attention.2} parent=5 // pred_check_branch
      %538 = sbr.rel (%p536) target = $region48
    $region47: #{semantic_attention.2} parent=5 // pred_region
      %s539 = ssub.s32 %s10, 2
      // Predicated region
      $region49: #{semantic_attention.2} parent=47 // pred_check
        %p540 = pneg %p148
      $region50: #{semantic_attention.2} parent=47 // pred_check_branch
        %542 = sbr.rel (%p540) target = $region52
      $region51: #{semantic_attention.2} parent=47 // pred_region
        %p543 = scmp.lt.s32.totalorder %s21, 1
        %s544 = scalar_select %p543, %s21, 1
        %s545 = smul.addr %s544, 8
        %s546 = scalar_lea.vmem %s4, %s545
      $region52: #{semantic_attention.2} parent=47 // pred_fallthru
        _
    $region48: #{semantic_attention.2} parent=5 // pred_fallthru
      _
  $region6: #{semantic_attention.2} parent=0 // loop_footer
    %s14 = sadd.s32 1, %s10
  $region7: #{semantic_attention.2} parent=0 // loop_footer_branch
    %9 = sbr.rel target = $region3
  $region8: #{semantic_attention.2} parent=0 // loop_exit
    _

</llo_original>
